<compile_context>
chip_gen: v5e
topology: v5e:2x2
jax: 0.10.0
libtpu: 0.0.40
codegen_flags: <defaults>
</compile_context>

<pallas_src>
import functools

import jax
import jax.numpy as jnp
from jax.experimental import pallas as pl
from jax.experimental.pallas import tpu as pltpu


# ---------------------------------------------------------------------------
# Kernels.
# ---------------------------------------------------------------------------
def _scaled_matmul_acc_kernel(inv_sigma_ref, x_ref, wt_ref, b_ref, y_ref, acc_ref):
    """Multi-K-step GEMM with f32 VMEM accumulator; fused scale+bias epilogue."""
    k = pl.program_id(2)
    prod = jnp.dot(x_ref[...], wt_ref[...], preferred_element_type=jnp.float32)

    @pl.when(k == 0)
    def _first():
        acc_ref[...] = prod

    @pl.when(k != 0)
    def _accum():
        acc_ref[...] += prod

    @pl.when(k == pl.num_programs(2) - 1)
    def _finalize():
        inv_sigma = inv_sigma_ref[0, 0]
        y_ref[...] = (acc_ref[...] * inv_sigma + b_ref[...]).astype(y_ref.dtype)


def _scaled_matmul_single_k_kernel(inv_sigma_ref, x_ref, wt_ref, b_ref, y_ref):
    """Single-K-step GEMM: no accumulator scratch round-trip."""
    prod = jnp.dot(x_ref[...], wt_ref[...], preferred_element_type=jnp.float32)
    y_ref[...] = (prod * inv_sigma_ref[0, 0] + b_ref[...]).astype(y_ref.dtype)


# ---------------------------------------------------------------------------
# Tiling helpers (all static / trace-time Python).
# ---------------------------------------------------------------------------
_MIB = 1024 * 1024


def _round_up(x, m):
    return (x + m - 1) // m * m


def _largest_divisor(n, cap, align):
    """Largest divisor of n that is a multiple of `align` and <= cap (n % align == 0)."""
    cap = max(align, min(cap, n))
    best = align
    d = align
    while d <= cap:
        if n % d == 0:
            best = d
        d += align
    return best


def _vmem_capacity_bytes():
    try:
        return int(pltpu.get_tpu_info().vmem_capacity_bytes)
    except Exception:
        return 64 * _MIB  # conservative: v7x per-TensorCore VMEM


_VMEM_CAPACITY = _vmem_capacity_bytes()
# Scoped-VMEM limit we ask the compiler for: ~3/4 of physical, clamped.
_VMEM_LIMIT = int(max(32 * _MIB, min(_VMEM_CAPACITY * 3 // 4, 96 * _MIB)))
_TILE_BUDGET = _VMEM_LIMIT - 4 * _MIB  # headroom for compiler-internal scratch


def _tile_vmem_bytes(tm, tn, tk, in_bytes, out_bytes):
    return (
        2 * (tm * tk + tk * tn) * in_bytes  # double-buffered x / W^T tiles
        + 2 * tm * tn * out_bytes           # double-buffered output tile
        + 2 * tn * 4                        # bias tile
        + tm * tn * 4                       # f32 accumulator scratch
    )


def _choose_tiles(B, K, N, in_bytes, out_bytes):
    mp = _round_up(max(B, 1), 8)
    kp = _round_up(max(K, 1), 128)
    np_ = _round_up(max(N, 1), 128)

    tk_cap = 1024 if in_bytes <= 2 else 512
    tm = _largest_divisor(mp, 512, 8)
    tn = _largest_divisor(np_, 512, 128)
    tk = _largest_divisor(kp, tk_cap, 128)

    # Shrink until the double-buffered working set fits the VMEM budget.
    while (
        _tile_vmem_bytes(tm, tn, tk, in_bytes, out_bytes) > _TILE_BUDGET
        and (tk > 128 or tn > 128 or tm > 8)
    ):
        if tk >= max(tn, tm) and tk > 128:
            tk = _largest_divisor(kp, tk // 2, 128)
        elif tn >= tm and tn > 128:
            tn = _largest_divisor(np_, tn // 2, 128)
        elif tm > 8:
            tm = _largest_divisor(mp, tm // 2, 8)
        else:
            break

    # Give both v7x TensorCores work: make sure the parallel (M,N) portion of
    # the grid has >=2 steps whenever the problem allows it (prefer splitting M
    # to keep the N tiles lane-dense and balanced).
    if (mp // tm) * (np_ // tn) == 1:
        if mp >= 16:
            tm = _largest_divisor(mp, mp // 2, 8)
        elif np_ >= 256:
            tn = _largest_divisor(np_, np_ // 2, 128)

    return tm, tn, tk, mp, kp, np_


# ---------------------------------------------------------------------------
# Wrapper.
# ---------------------------------------------------------------------------
@functools.partial(jax.jit, static_argnames=("mxu_dtype",))
def equal_linear(x, w, u, b, *, mxu_dtype=jnp.bfloat16):
    """EqualLinear forward.

    x: (B, in_dim), w: (out_dim, in_dim)  (PyTorch Linear layout),
    u: (1, out_dim) spectral-norm power-iteration vector, b: (1, out_dim) or (out_dim,).
    mxu_dtype: dtype fed to the MXU (default bf16; accumulation is always f32).
    Returns y: (B, out_dim) in x.dtype.
    """
    eps = 1e-12

    # --- spectral norm (hoisted out of the hot kernel, always f32) -----------
    w32 = w.astype(jnp.float32)
    u32 = u.astype(jnp.float32).reshape(1, -1)
    v = u32 @ w32                                       # (1, in)
    v = v / jnp.maximum(jnp.linalg.norm(v), eps)
    wv = v @ w32.T                                      # (1, out)
    u_new = wv / jnp.maximum(jnp.linalg.norm(wv), eps)
    sigma = jnp.sum(u_new * wv)
    inv_sigma = (1.0 / sigma).reshape(1, 1).astype(jnp.float32)
    # TODO(synk): PyTorch spectral_norm (training mode) writes u_new back into
    # the module buffer; this forward is stateless and discards it.

    B, K = x.shape
    N = w.shape[0]

    # Cast to the MXU dtype *before* transpose/pad so wrapper copies are cheap.
    if mxu_dtype is not None and x.dtype != jnp.dtype(mxu_dtype):
        x_mm = x.astype(mxu_dtype)
    else:
        x_mm = x
    if mxu_dtype is not None and w.dtype != jnp.dtype(mxu_dtype):
        w_mm = w.astype(mxu_dtype)
    else:
        w_mm = w
    wt = w_mm.T                                          # (K, N), lane-dense RHS

    in_bytes = jnp.dtype(x_mm.dtype).itemsize
    out_bytes = jnp.dtype(x.dtype).itemsize
    tm, tn, tk, mp, kp, np_ = _choose_tiles(B, K, N, in_bytes, out_bytes)

    # Zero-pad only when needed (static check); padded K contributes 0 to the
    # accumulation, padded M/N rows/cols are sliced off afterwards.
    x_p = x_mm if (mp == B and kp == K) else jnp.pad(x_mm, ((0, mp - B), (0, kp - K)))
    wt_p = wt if (kp == K and np_ == N) else jnp.pad(wt, ((0, kp - K), (0, np_ - N)))
    b32 = b.reshape(1, -1).astype(jnp.float32)
    b_p = b32 if np_ == N else jnp.pad(b32, ((0, 0), (0, np_ - N)))

    m_steps, n_steps, k_steps = mp // tm, np_ // tn, kp // tk

    if k_steps == 1:
        # No accumulator scratch: single fused dot -> scale -> bias -> store.
        y_p = pl.pallas_call(
            _scaled_matmul_single_k_kernel,
            out_shape=jax.ShapeDtypeStruct((mp, np_), x.dtype),
            grid_spec=pltpu.PrefetchScalarGridSpec(
                num_scalar_prefetch=0,
                grid=(m_steps, n_steps),
                in_specs=[
                    pl.BlockSpec(memory_space=pltpu.MemorySpace.SMEM),    # inv_sigma
                    pl.BlockSpec((tm, kp), lambda i, j: (i, 0)),          # x tile
                    pl.BlockSpec((kp, tn), lambda i, j: (0, j)),          # W^T tile
                    pl.BlockSpec((1, tn), lambda i, j: (0, j)),           # bias tile
                ],
                out_specs=pl.BlockSpec((tm, tn), lambda i, j: (i, j)),
            ),
            compiler_params=pltpu.CompilerParams(
                dimension_semantics=("parallel", "parallel"),
                vmem_limit_bytes=_VMEM_LIMIT,
            ),
        )(inv_sigma, x_p, wt_p, b_p)
    else:
        y_p = pl.pallas_call(
            _scaled_matmul_acc_kernel,
            out_shape=jax.ShapeDtypeStruct((mp, np_), x.dtype),
            grid_spec=pltpu.PrefetchScalarGridSpec(
                num_scalar_prefetch=0,
                grid=(m_steps, n_steps, k_steps),
                in_specs=[
                    pl.BlockSpec(memory_space=pltpu.MemorySpace.SMEM),     # inv_sigma
                    pl.BlockSpec((tm, tk), lambda i, j, k: (i, k)),        # x tile
                    pl.BlockSpec((tk, tn), lambda i, j, k: (k, j)),        # W^T tile
                    pl.BlockSpec((1, tn), lambda i, j, k: (0, j)),         # bias tile
                ],
                out_specs=pl.BlockSpec((tm, tn), lambda i, j, k: (i, j)),
                scratch_shapes=[pltpu.VMEM((tm, tn), jnp.float32)],
            ),
            compiler_params=pltpu.CompilerParams(
                dimension_semantics=("parallel", "parallel", "arbitrary"),
                vmem_limit_bytes=_VMEM_LIMIT,
            ),
        )(inv_sigma, x_p, wt_p, b_p)

    if mp == B and np_ == N:
        return y_p
    return y_p[:B, :N]


# ---------------------------------------------------------------------------
# Pure-JAX reference.
# ---------------------------------------------------------------------------
def equal_linear_ref(x, w, u, b):
    eps = 1e-12
    v = u @ w
    v = v / jnp.maximum(jnp.linalg.norm(v), eps)
    wv = v @ w.T
    u_new = wv / jnp.maximum(jnp.linalg.norm(wv), eps)
    sigma = jnp.sum(u_new * wv)
    return x @ (w / sigma).T + b.reshape(1, -1)


if __name__ == "__main__":
    key = jax.random.PRNGKey(0)
    k_x, k_w, k_u, k_x2, k_w2, k_u2 = jax.random.split(key, 6)

    # --- small shapes (single-K-step kernel, single padded grid step) --------
    batch, in_dim, out_dim = 8, 32, 16
    # EqualLinear.__init__: weight ~ N(0, 0.02), bias = 0, u = normalized randn.
    w = (0.02 * jax.random.normal(k_w, (out_dim, in_dim))).astype(jnp.float32)
    b = jnp.zeros((1, out_dim), jnp.float32)
    u = jax.random.normal(k_u, (1, out_dim)).astype(jnp.float32)
    u = u / jnp.maximum(jnp.linalg.norm(u), 1e-12)
    x = jax.random.normal(k_x, (batch, in_dim), jnp.float32)
    y_ref = equal_linear_ref(x, w, u, b)

    # Exact f32 MXU path: tight check.
    y_f32 = jax.block_until_ready(equal_linear(x, w, u, b, mxu_dtype=jnp.float32))
    assert jnp.allclose(y_f32, y_ref, atol=1e-5, rtol=1e-5), "small-shape f32 mismatch"

    # Default bf16 MXU inputs (f32 accumulation): looser tolerance is expected.
    y_bf16 = jax.block_until_ready(equal_linear(x, w, u, b))
    assert jnp.allclose(y_bf16, y_ref, atol=3e-2, rtol=3e-2), "small-shape bf16 mismatch"

    # --- larger shapes (exercises tiled M/N/K grid, accumulator, M split) ----
    batch2, in_dim2, out_dim2 = 256, 1024, 384
    w2 = (0.02 * jax.random.normal(k_w2, (out_dim2, in_dim2))).astype(jnp.float32)
    b2 = jnp.zeros((1, out_dim2), jnp.float32)
    u2 = jax.random.normal(k_u2, (1, out_dim2)).astype(jnp.float32)
    u2 = u2 / jnp.maximum(jnp.linalg.norm(u2), 1e-12)
    x2 = jax.random.normal(k_x2, (batch2, in_dim2), jnp.float32)
    y2_ref = equal_linear_ref(x2, w2, u2, b2)

    # f32 path -> K split across 2 steps -> accumulator kernel, tight check.
    y2_f32 = jax.block_until_ready(equal_linear(x2, w2, u2, b2, mxu_dtype=jnp.float32))
    assert jnp.allclose(y2_f32, y2_ref, atol=1e-3, rtol=1e-3), "large-shape f32 mismatch"

    # Default bf16 path, loose check.
    y2_bf16 = jax.block_until_ready(equal_linear(x2, w2, u2, b2))
    assert jnp.allclose(y2_bf16, y2_ref, atol=3e-2, rtol=3e-2), "large-shape bf16 mismatch"

    print("KERNEL_OK")
</pallas_src>

<mosaic_0001>
module attributes {stable_mosaic.version = 11 : i64} {
  func.func @_scaled_matmul_single_k_kernel(%arg0: i32, %arg1: i32, %arg2: memref<1x1xf32, #tpu.memory_space<smem>>, %arg3: memref<8x128xf32, #tpu.memory_space<vmem>>, %arg4: memref<128x128xf32, #tpu.memory_space<vmem>>, %arg5: memref<1x128xf32, #tpu.memory_space<vmem>>, %arg6: memref<8x128xf32, #tpu.memory_space<vmem>>) attributes {dimension_semantics = [#tpu.dimension_semantics<parallel>, #tpu.dimension_semantics<parallel>], iteration_bounds = array<i64: 1, 1>, scalar_prefetch = 0 : i64, scratch_operands = 0 : i64, tpu.core_type = #tpu.core_type<tc>, window_params = [{transform_indices = @transform_0, window_bounds = array<i64: 1, 1>}, {transform_indices = @transform_1, window_bounds = array<i64: 8, 128>}, {transform_indices = @transform_2, window_bounds = array<i64: 128, 128>}, {transform_indices = @transform_3, window_bounds = array<i64: 1, 128>}, {transform_indices = @transform_4, window_bounds = array<i64: 8, 128>}]} {
    %c0 = arith.constant 0 : index
    %c0_0 = arith.constant 0 : index
    %0 = vector.load %arg3[%c0, %c0_0] : memref<8x128xf32, #tpu.memory_space<vmem>>, vector<8x128xf32>
    %c0_1 = arith.constant 0 : index
    %c0_2 = arith.constant 0 : index
    %1 = vector.load %arg4[%c0_1, %c0_2] : memref<128x128xf32, #tpu.memory_space<vmem>>, vector<128x128xf32>
    %cst = arith.constant dense<0.000000e+00> : vector<8x128xf32>
    %2 = tpu.matmul %0, %1, %cst {dimension_numbers = #tpu.dot_dimension_numbers<[1], [0], [0], [1], [0, 0, 1, 1], [], []>} : vector<8x128xf32>, vector<128x128xf32>, vector<8x128xf32> -> vector<8x128xf32>
    %c0_3 = arith.constant 0 : index
    %c0_4 = arith.constant 0 : index
    %3 = memref.load %arg2[%c0_3, %c0_4] : memref<1x1xf32, #tpu.memory_space<smem>>
    %4 = vector.broadcast %3 : f32 to vector<8x128xf32>
    %5 = arith.mulf %2, %4 : vector<8x128xf32>
    %c0_5 = arith.constant 0 : index
    %c0_6 = arith.constant 0 : index
    %6 = vector.load %arg5[%c0_5, %c0_6] : memref<1x128xf32, #tpu.memory_space<vmem>>, vector<1x128xf32>
    %7 = vector.broadcast %6 : vector<1x128xf32> to vector<8x128xf32>
    %8 = arith.addf %5, %7 : vector<8x128xf32>
    %c0_7 = arith.constant 0 : index
    %c0_8 = arith.constant 0 : index
    %9 = vector.load %arg6[%c0_7, %c0_8] : memref<8x128xf32, #tpu.memory_space<vmem>>, vector<8x128xf32>
    tpu.vector_store %arg6[%c0_7, %c0_8], %8 {strides = array<i32>} : memref<8x128xf32, #tpu.memory_space<vmem>>, vector<8x128xf32>,
    return
  }
  func.func @transform_0(%arg0: i32, %arg1: i32) -> (i32, i32) {
    %c0_i32 = arith.constant 0 : i32
    %c0_i32_0 = arith.constant 0 : i32
    %c0_i32_1 = arith.constant 0 : i32
    return %c0_i32, %c0_i32_0 : i32, i32
  }
  func.func @transform_1(%arg0: i32, %arg1: i32) -> (i32, i32) {
    %c0_i32 = arith.constant 0 : i32
    %c0_i32_0 = arith.constant 0 : i32
    return %arg0, %c0_i32 : i32, i32
  }
  func.func @transform_2(%arg0: i32, %arg1: i32) -> (i32, i32) {
    %c0_i32 = arith.constant 0 : i32
    %c0_i32_0 = arith.constant 0 : i32
    return %c0_i32, %arg1 : i32, i32
  }
  func.func @transform_3(%arg0: i32, %arg1: i32) -> (i32, i32) {
    %c0_i32 = arith.constant 0 : i32
    %c0_i32_0 = arith.constant 0 : i32
    return %c0_i32, %arg1 : i32, i32
  }
  func.func @transform_4(%arg0: i32, %arg1: i32) -> (i32, i32) {
    %c0_i32 = arith.constant 0 : i32
    return %arg0, %arg1 : i32, i32
  }
}

</mosaic_0001>

<llo_original>
// kernel: equal_linear.1
$region0: #{equal_linear.1}
  #allocation0 [shape = 'u32[]', space=smem, size = 0x4, offset = 0x4, fixed_abs, tag = 'smem constant byte address 0x4 - core index']
  #allocation1 [shape = 'u32[72,128]{1,0:T(1,128)}', space=vmem, size = 0x9000, scoped, tag = 'internal scratch']
  #allocation2 [shape = 'f32[1,1]{1,0:T(1,128)S(6)}', space=smem, size = 0x200, scoped, tag = 'scoped memory for equal_linear.1']
  %s0 = inlined_call_operand.<no memory space> [shape: f32[1,1], index: 0, kind: input, shape index: {}]
  %s1 = inlined_call_operand.vmem [shape: f32[8,128], index: 1, kind: input, shape index: {}]
  %s2 = inlined_call_operand.vmem [shape: f32[128,128], index: 2, kind: input, shape index: {}]
  %s3 = inlined_call_operand.vmem [shape: f32[1,128], index: 3, kind: input, shape index: {}]
  %s4 = inlined_call_operand.hbm [shape: f32[8,128], index: 4, kind: output, shape index: {}]
  %s5 = sld [smem:[#allocation0]]
  $region26: #{equal_linear.1} parent=0
    _
  %s7 = ssub.s32 1, %s5
  %s8 = scalar_select 0, %s7, %s5
  %9 = sst [smem:[#allocation2]] %s0
  $region1: #{equal_linear.1} parent=0
    #allocation3 [shape = 'u8[4096]{0}', space=vmem, size = 0x1000, scoped, tag = 'output window, operand 0, single buffered']
    #allocation4 [shape = 's32[1]{0}', space=sflag, size = 0x4, scoped, tag = 'scoped memory for equal_linear.1']
    %10 = vsyncpa [#allocation4], 0
    // Predicated region
    $region2: #{equal_linear.1} parent=1 // pred_check
      _
    $region3: #{equal_linear.1} parent=1 // pred_check_branch
      %12 = sbr.rel (0) target = $region5
    $region4: #{equal_linear.1} parent=1 // pred_region
      _
    $region5: #{equal_linear.1} parent=1 // pred_fallthru
      _
    // Predicated region
    $region6: #{equal_linear.1} parent=1 // pred_check
      _
    $region7: #{equal_linear.1} parent=1 // pred_check_branch
      %14 = sbr.rel (0) target = $region9
    $region8: #{equal_linear.1} parent=1 // pred_region
      _
    $region9: #{equal_linear.1} parent=1 // pred_fallthru
      _
    // Predicated region
    $region10: #{equal_linear.1} parent=1 // pred_check
      _
    $region11: #{equal_linear.1} parent=1 // pred_check_branch
      %16 = sbr.rel (0) target = $region13
    $region12: #{equal_linear.1} parent=1 // pred_region
      _
    $region13: #{equal_linear.1} parent=1 // pred_fallthru
      _
    // Predicated region
    $region14: #{equal_linear.1} parent=1 // pred_check
      _
    $region15: #{equal_linear.1} parent=1 // pred_check_branch
      %18 = sbr.rel (0) target = $region17
    $region16: #{equal_linear.1} parent=1 // pred_region
      _
    $region17: #{equal_linear.1} parent=1 // pred_fallthru
      _
    %v19 = vld [vmem:[%s1] sm:$0xff]
    %v20 = vld [vmem:[%s2] sm:$0xff]
    %v21 = vld [vmem:[%s2 + $0x8] sm:$0xff]
    %v22 = vld [vmem:[%s2 + $0x10] sm:$0xff]
    %v23 = vld [vmem:[%s2 + $0x18] sm:$0xff]
    %v24 = vld [vmem:[%s2 + $0x20] sm:$0xff]
    %v25 = vld [vmem:[%s2 + $0x28] sm:$0xff]
    %v26 = vld [vmem:[%s2 + $0x30] sm:$0xff]
    %v27 = vld [vmem:[%s2 + $0x38] sm:$0xff]
    %v28 = vld [vmem:[%s2 + $0x40] sm:$0xff]
    %v29 = vld [vmem:[%s2 + $0x48] sm:$0xff]
    %v30 = vld [vmem:[%s2 + $0x50] sm:$0xff]
    %v31 = vld [vmem:[%s2 + $0x58] sm:$0xff]
    %v32 = vld [vmem:[%s2 + $0x60] sm:$0xff]
    %v33 = vld [vmem:[%s2 + $0x68] sm:$0xff]
    %v34 = vld [vmem:[%s2 + $0x70] sm:$0xff]
    %v35 = vld [vmem:[%s2 + $0x78] sm:$0xff]
    %36 = vmatpush.msra.mxu0 %v35
    %37 = vmatpush.msra.mxu0 %v34
    %38 = vmatpush.msra.mxu0 %v33
    %39 = vmatpush.msra.mxu0 %v32
    %40 = vmatpush.msra.mxu0 %v31
    %41 = vmatpush.msra.mxu0 %v30
    %42 = vmatpush.msra.mxu0 %v29
    %43 = vmatpush.msra.mxu0 %v28
    %44 = vmatpush.msra.mxu0 %v27
    %45 = vmatpush.msra.mxu0 %v26
    %46 = vmatpush.msra.mxu0 %v25
    %47 = vmatpush.msra.mxu0 %v24
    %48 = vmatpush.msra.mxu0 %v23
    %49 = vmatpush.msra.mxu0 %v22
    %50 = vmatpush.msra.mxu0 %v21
    %51 = vmatpush.msra.mxu0 %v20
    %52 = vmatmul.f32.gmra.mxu0 %v19
    %v53 = vpop.f32.mrf.mxu0
    %v54 = vadd.f32 0.0, %v53
    %55 = vdwg.mxu0
    %s56 = sld [smem:[#allocation2]]
    %v57 = vstv %s56
    %v58 = vmul.f32 %v54, %v57
    %v59 = vld [vmem:[%s3] sm:$0x1]
    %v61 = vperm.slane %v59, 0
    %v63 = vadd.f32 %v58, %v61
    %64 = vst [vmem:[#allocation3] sm:$0xff] %v63
    // Predicated region
    $region18: #{equal_linear.1} parent=1 // pred_check
      _
    $region19: #{equal_linear.1} parent=1 // pred_check_branch
      %66 = sbr.rel (0) target = $region21
    $region20: #{equal_linear.1} parent=1 // pred_region
      %68 = vsyncadd [#allocation4], 0
      %s70 = sshll.u32 [#allocation3], 4
      %s71 = int_to_ptr.vmem [resolvable:$true] %s70
      %s72 = sshll.u32 %s4, 4
      %s73 = int_to_ptr.hbm [resolvable:$true] %s72
      %75 = dma.vmem_to_hbm [thread:$0]  %s71, 128, %s73, [#allocation4]
    $region21: #{equal_linear.1} parent=1 // pred_fallthru
      _
    // Predicated region
    $region22: #{equal_linear.1} parent=1 // pred_check
      _
    $region23: #{equal_linear.1} parent=1 // pred_check_branch
      %77 = sbr.rel (0) target = $region25
    $region24: #{equal_linear.1} parent=1 // pred_region
      %79 = dma.done [#allocation4], 128
    $region25: #{equal_linear.1} parent=1 // pred_fallthru
      _
    %80 = vsyncpa [#allocation4], 1

</llo_original>
